<compile_context>
chip_gen: v6e
topology: v6e:2x2x1
jax: 0.10.0
libtpu: 0.0.40
codegen_flags: <defaults>
</compile_context>

<pallas_src>
import functools

import jax
import jax.numpy as jnp
from jax import lax
from jax.experimental import pallas as pl
from jax.experimental.pallas import tpu as pltpu

# Leading grid axis of the stats pass.  Marked "parallel" so a 2-TensorCore
# chip (v7x) splits it across cores; on 1-TC chips (v5e/v6e) it just runs two
# short sequential chunks (one extra ~0.35us grid step - negligible).
_CORE_SPLIT = 2


def _stats_kernel(x_ref, agg_ref, acc_ref, *, total_m, tile_m,
                  tiles_per_split, needs_mask):
    """Per-core accumulation of per-channel [sum; sum_sq] over its M tiles."""
    c = pl.program_id(0)
    i = pl.program_id(1)

    @pl.when(i == 0)
    def _init():
        acc_ref[...] = jnp.zeros_like(acc_ref)

    def _accumulate(x):
        xs = jnp.sum(x, axis=0, keepdims=True)               # (1, CD)
        xss = jnp.sum(x * x, axis=0, keepdims=True)          # (1, CD)
        both = jnp.concatenate([xs, xss], axis=0)            # (2, CD)
        # Aggregate the D columns of each channel with a 0/1 matrix (MXU).
        part = jnp.dot(both, agg_ref[...],
                       preferred_element_type=jnp.float32)   # (2, Cp)
        acc_ref[...] += part[None, :, :]                     # (1, 2, Cp)

    g = c * tiles_per_split + i                              # global tile idx
    if needs_mask:
        row0 = g * tile_m
        is_full = row0 + tile_m <= total_m

        @pl.when(is_full)
        def _full_tile():
            _accumulate(x_ref[...].astype(jnp.float32))

        @pl.when(jnp.logical_not(is_full))
        def _ragged_or_ghost_tile():
            # Ragged last tile (0 < rows_valid < tile_m) or ghost tile past
            # the end of the split (rows_valid <= 0 -> contributes nothing).
            x = x_ref[...].astype(jnp.float32)
            rows_valid = total_m - row0
            rid = lax.broadcasted_iota(jnp.int32, x.shape, 0)
            _accumulate(jnp.where(rid < rows_valid, x, 0.0))
    else:
        _accumulate(x_ref[...].astype(jnp.float32))


def _norm_kernel(stats_ref, gamma_ref, beta_ref, bcast_ref, x_ref, o_ref, *,
                 inv_count, eps):
    """y = x * scale + shift, with scale/shift derived in-kernel from stats."""
    stats = jnp.sum(stats_ref[...], axis=0)                  # (2, Cp)
    mean = stats[0:1, :] * inv_count                         # (1, Cp)
    ex2 = stats[1:2, :] * inv_count                          # (1, Cp)
    var = jnp.maximum(ex2 - mean * mean, 0.0)                # biased variance
    inv = lax.rsqrt(var + eps)
    scale_c = gamma_ref[...] * inv                           # (1, Cp)
    shift_c = beta_ref[...] - mean * scale_c                 # (1, Cp)
    # Broadcast per-channel scale/shift back to the CD lanes (0/1 matmul).
    ss = jnp.dot(jnp.concatenate([scale_c, shift_c], axis=0), bcast_ref[...],
                 preferred_element_type=jnp.float32)         # (2, CD)
    x = x_ref[...].astype(jnp.float32)
    o_ref[...] = (x * ss[0:1, :] + ss[1:2, :]).astype(o_ref.dtype)
    # Note: the ragged last tile's out-of-bounds output rows are dropped by
    # Pallas on writeback; their (garbage) inputs never feed the stats path.


def _choose_tile_m(m, cd, itemsize, target_bytes=4 * 1024 * 1024):
    """Largest M-tile (sublane-packed, <=1024 rows) with ~target_bytes/block."""
    sub = max(1, 32 // itemsize)          # f32 -> 8, bf16 -> 16, int8 -> 32
    mt = target_bytes // max(1, cd * itemsize)
    mt = int(min(1024, mt))
    mt -= mt % sub
    mt = max(sub, mt)
    if mt >= m:
        return m                          # single full-extent block
    return mt


def batch_norm_forward(x, gamma, beta, *, channels, eps=1e-5):
    """x: (B, N, C*D) -> (B, N, C*D). Training-mode BatchNorm2d forward."""
    B, N, CD = x.shape
    C = channels
    assert CD % C == 0, "last dim must be divisible by channels"
    D = CD // C
    M = B * N
    itemsize = x.dtype.itemsize

    x2d = x.reshape(M, CD)                # free reshape, no transpose
    tile_m = _choose_tile_m(M, CD, itemsize)
    n_tiles = pl.cdiv(M, tile_m)
    num_split = _CORE_SPLIT if n_tiles >= 2 else 1
    tiles_per_split = pl.cdiv(n_tiles, num_split)
    needs_mask = (num_split * tiles_per_split * tile_m) != M

    # Channel dim padded to a full lane tile so every in-kernel matmul operand
    # / stats block is lane-aligned.  Padded channels carry zeros end-to-end.
    Cp = max(128, ((C + 127) // 128) * 128)

    # Compile-time 0/1 channel-membership matrices (constant-folded by XLA,
    # never on the pass-1 -> pass-2 critical path).
    col_ch = jnp.arange(CD, dtype=jnp.int32) // D
    ch_ids = jnp.arange(Cp, dtype=jnp.int32)
    agg = (col_ch[:, None] == ch_ids[None, :]).astype(jnp.float32)    # (CD, Cp)
    bcast = (ch_ids[:, None] == col_ch[None, :]).astype(jnp.float32)  # (Cp, CD)

    gamma_p = jnp.zeros((1, Cp), jnp.float32).at[0, :C].set(
        gamma.astype(jnp.float32))
    beta_p = jnp.zeros((1, Cp), jnp.float32).at[0, :C].set(
        beta.astype(jnp.float32))

    tile_bytes = tile_m * CD * itemsize
    aux_bytes = Cp * CD * 4
    vmem_limit = int(min(max(4 * tile_bytes + 4 * aux_bytes + (4 << 20),
                             32 << 20), 48 << 20))

    # ---- Pass 1: per-channel sum / sum-of-squares (core-split over M) ------
    stats = pl.pallas_call(
        functools.partial(_stats_kernel, total_m=M, tile_m=tile_m,
                          tiles_per_split=tiles_per_split,
                          needs_mask=needs_mask),
        out_shape=jax.ShapeDtypeStruct((num_split, 2, Cp), jnp.float32),
        grid=(num_split, tiles_per_split),
        in_specs=[
            pl.BlockSpec(
                (tile_m, CD),
                lambda c, i: (jnp.minimum(c * tiles_per_split + i,
                                          n_tiles - 1), 0)),
            pl.BlockSpec((CD, Cp), lambda c, i: (0, 0)),
        ],
        out_specs=pl.BlockSpec((1, 2, Cp), lambda c, i: (c, 0, 0)),
        compiler_params=pltpu.CompilerParams(
            dimension_semantics=("parallel", "arbitrary"),
            vmem_limit_bytes=vmem_limit),
        cost_estimate=pl.CostEstimate(
            flops=3 * M * CD,
            transcendentals=0,
            bytes_accessed=M * CD * itemsize),
    )(x2d, agg)

    # ---- Pass 2: elementwise normalize (scale/shift derived in-kernel) -----
    out2d = pl.pallas_call(
        functools.partial(_norm_kernel, inv_count=1.0 / float(M * D), eps=eps),
        out_shape=jax.ShapeDtypeStruct((M, CD), x.dtype),
        grid=(n_tiles,),
        in_specs=[
            pl.BlockSpec((num_split, 2, Cp), lambda i: (0, 0, 0)),  # stats
            pl.BlockSpec((1, Cp), lambda i: (0, 0)),                # gamma
            pl.BlockSpec((1, Cp), lambda i: (0, 0)),                # beta
            pl.BlockSpec((Cp, CD), lambda i: (0, 0)),               # bcast mat
            pl.BlockSpec((tile_m, CD), lambda i: (i, 0)),           # x tile
        ],
        out_specs=pl.BlockSpec((tile_m, CD), lambda i: (i, 0)),
        compiler_params=pltpu.CompilerParams(
            dimension_semantics=("parallel",),
            vmem_limit_bytes=vmem_limit),
        cost_estimate=pl.CostEstimate(
            flops=2 * M * CD,
            transcendentals=0,
            bytes_accessed=2 * M * CD * itemsize),
    )(stats, gamma_p, beta_p, bcast, x2d)

    return out2d.reshape(B, N, CD)


def _reference(x, gamma, beta, *, channels, eps=1e-5):
    B, N, CD = x.shape
    C = channels
    D = CD // C
    xr = x.reshape(B, N, C, D).transpose(0, 2, 1, 3)          # (B, C, N, D)
    mean = jnp.mean(xr, axis=(0, 2, 3), keepdims=True)
    var = jnp.mean((xr - mean) ** 2, axis=(0, 2, 3), keepdims=True)
    y = (xr - mean) / jnp.sqrt(var + eps)
    y = y * gamma.reshape(1, C, 1, 1) + beta.reshape(1, C, 1, 1)
    return y.transpose(0, 2, 1, 3).reshape(B, N, CD)


if __name__ == "__main__":
    key = jax.random.PRNGKey(0)
    kx, kg, kb, kx2 = jax.random.split(key, 4)

    # Small config consistent with the module: x is (B, N, C*D).
    B, N, C, D = 2, 8, 4, 32
    x = jax.random.normal(kx, (B, N, C * D), dtype=jnp.float32)
    # nn.BatchNorm2d default init is weight=1, bias=0; perturb so the affine
    # path is actually exercised.
    gamma = 1.0 + 0.1 * jax.random.normal(kg, (C,), dtype=jnp.float32)
    beta = 0.1 * jax.random.normal(kb, (C,), dtype=jnp.float32)

    fwd = jax.jit(functools.partial(batch_norm_forward, channels=C))
    out = jax.block_until_ready(fwd(x, gamma, beta))
    ref = _reference(x, gamma, beta, channels=C)
    assert out.shape == (B, N, C * D)
    assert jnp.allclose(out, ref, atol=1e-4, rtol=1e-4), "mismatch (small)"

    # Second config exercising multi-tile accumulation, the core-split axis,
    # and the ragged last tile (M = 2*1030 = 2060 rows at tile_m = 1024).
    B2, N2 = 2, 1030
    x2 = jax.random.normal(kx2, (B2, N2, C * D), dtype=jnp.float32)
    out2 = jax.block_until_ready(fwd(x2, gamma, beta))
    ref2 = _reference(x2, gamma, beta, channels=C)
    assert jnp.allclose(out2, ref2, atol=1e-4, rtol=1e-4), "mismatch (ragged)"

    print("KERNEL_OK")
</pallas_src>

<mosaic_0001>
module attributes {stable_mosaic.version = 11 : i64} {
  func.func @_stats_kernel(%arg0: i32, %arg1: i32, %arg2: memref<16x128xf32, #tpu.memory_space<vmem>>, %arg3: memref<128x128xf32, #tpu.memory_space<vmem>>, %arg4: memref<1x2x128xf32, #tpu.memory_space<vmem>>) attributes {dimension_semantics = [#tpu.dimension_semantics<parallel>, #tpu.dimension_semantics<arbitrary>], iteration_bounds = array<i64: 1, 1>, scalar_prefetch = 0 : i64, scratch_operands = 0 : i64, tpu.core_type = #tpu.core_type<tc>, window_params = [{transform_indices = @transform_0, window_bounds = array<i64: 16, 128>}, {pipeline_mode = #tpu.pipeline_mode<synchronous>, transform_indices = @transform_1, window_bounds = array<i64: 128, 128>}, {transform_indices = @transform_2, window_bounds = array<i64: 1, 2, 128>}]} {
    %c0_i32 = arith.constant 0 : i32
    %0 = arith.cmpi eq, %arg1, %c0_i32 : i32
    %1 = arith.extui %0 : i1 to i32
    %c0_i32_0 = arith.constant 0 : i32
    %2 = arith.cmpi ne, %1, %c0_i32_0 : i32
    scf.if %2 {
      %cst_12 = arith.constant 0.000000e+00 : f32
      %16 = vector.broadcast %cst_12 : f32 to vector<1x2x128xf32>
      %c0_13 = arith.constant 0 : index
      %c0_14 = arith.constant 0 : index
      %c0_15 = arith.constant 0 : index
      %17 = vector.load %arg4[%c0_13, %c0_14, %c0_15] : memref<1x2x128xf32, #tpu.memory_space<vmem>>, vector<1x2x128xf32>
      tpu.vector_store %arg4[%c0_13, %c0_14, %c0_15], %16 {strides = array<i32>} : memref<1x2x128xf32, #tpu.memory_space<vmem>>, vector<1x2x128xf32>,
    } else {
    }
    %c0 = arith.constant 0 : index
    %c0_1 = arith.constant 0 : index
    %3 = vector.load %arg2[%c0, %c0_1] : memref<16x128xf32, #tpu.memory_space<vmem>>, vector<16x128xf32>
    %cst = arith.constant dense<0.000000e+00> : vector<128xf32>
    %4 = vector.multi_reduction <add>, %3, %cst [0] : vector<16x128xf32> to vector<128xf32>
    %5 = vector.shape_cast %4 : vector<128xf32> to vector<1x128xf32>
    %6 = arith.mulf %3, %3 : vector<16x128xf32>
    %cst_2 = arith.constant dense<0.000000e+00> : vector<128xf32>
    %7 = vector.multi_reduction <add>, %6, %cst_2 [0] : vector<16x128xf32> to vector<128xf32>
    %8 = vector.shape_cast %7 : vector<128xf32> to vector<1x128xf32>
    %9 = tpu.concatenate %5, %8 in 0 : vector<1x128xf32>, vector<1x128xf32> -> vector<2x128xf32>
    %c0_3 = arith.constant 0 : index
    %c0_4 = arith.constant 0 : index
    %10 = vector.load %arg3[%c0_3, %c0_4] : memref<128x128xf32, #tpu.memory_space<vmem>>, vector<128x128xf32>
    %cst_5 = arith.constant dense<0.000000e+00> : vector<2x128xf32>
    %11 = tpu.matmul %9, %10, %cst_5 {dimension_numbers = #tpu.dot_dimension_numbers<[1], [0], [0], [1], [0, 0, 1, 1], [], []>} : vector<2x128xf32>, vector<128x128xf32>, vector<2x128xf32> -> vector<2x128xf32>
    %c0_6 = arith.constant 0 : index
    %c0_7 = arith.constant 0 : index
    %c0_8 = arith.constant 0 : index
    %12 = vector.load %arg4[%c0_6, %c0_7, %c0_8] : memref<1x2x128xf32, #tpu.memory_space<vmem>>, vector<1x2x128xf32>
    %13 = vector.shape_cast %11 : vector<2x128xf32> to vector<1x2x128xf32>
    %14 = arith.addf %12, %13 : vector<1x2x128xf32>
    %c0_9 = arith.constant 0 : index
    %c0_10 = arith.constant 0 : index
    %c0_11 = arith.constant 0 : index
    %15 = vector.load %arg4[%c0_9, %c0_10, %c0_11] : memref<1x2x128xf32, #tpu.memory_space<vmem>>, vector<1x2x128xf32>
    tpu.vector_store %arg4[%c0_9, %c0_10, %c0_11], %14 {strides = array<i32>} : memref<1x2x128xf32, #tpu.memory_space<vmem>>, vector<1x2x128xf32>,
    return
  }
  func.func @transform_0(%arg0: i32, %arg1: i32) -> (i32, i32) {
    %c1_i32 = arith.constant 1 : i32
    %0 = arith.muli %arg0, %c1_i32 : i32
    %1 = arith.addi %0, %arg1 : i32
    %c0_i32 = arith.constant 0 : i32
    %2 = arith.minsi %1, %c0_i32 : i32
    %c0_i32_0 = arith.constant 0 : i32
    %c0_i32_1 = arith.constant 0 : i32
    return %2, %c0_i32_0 : i32, i32
  }
  func.func @transform_1(%arg0: i32, %arg1: i32) -> (i32, i32) {
    %c0_i32 = arith.constant 0 : i32
    %c0_i32_0 = arith.constant 0 : i32
    %c0_i32_1 = arith.constant 0 : i32
    return %c0_i32, %c0_i32_0 : i32, i32
  }
  func.func @transform_2(%arg0: i32, %arg1: i32) -> (i32, i32, i32) {
    %c0_i32 = arith.constant 0 : i32
    %c0_i32_0 = arith.constant 0 : i32
    %c0_i32_1 = arith.constant 0 : i32
    return %arg0, %c0_i32, %c0_i32_0 : i32, i32, i32
  }
}

module attributes {stable_mosaic.version = 11 : i64} {
  func.func @_norm_kernel(%arg0: i32, %arg1: memref<1x2x128xf32, #tpu.memory_space<vmem>>, %arg2: memref<1x128xf32, #tpu.memory_space<vmem>>, %arg3: memref<1x128xf32, #tpu.memory_space<vmem>>, %arg4: memref<128x128xf32, #tpu.memory_space<vmem>>, %arg5: memref<16x128xf32, #tpu.memory_space<vmem>>, %arg6: memref<16x128xf32, #tpu.memory_space<vmem>>) attributes {dimension_semantics = [#tpu.dimension_semantics<parallel>], iteration_bounds = array<i64: 1>, scalar_prefetch = 0 : i64, scratch_operands = 0 : i64, tpu.core_type = #tpu.core_type<tc>, window_params = [{pipeline_mode = #tpu.pipeline_mode<synchronous>, transform_indices = @transform_0, window_bounds = array<i64: 1, 2, 128>}, {pipeline_mode = #tpu.pipeline_mode<synchronous>, transform_indices = @transform_1, window_bounds = array<i64: 1, 128>}, {pipeline_mode = #tpu.pipeline_mode<synchronous>, transform_indices = @transform_2, window_bounds = array<i64: 1, 128>}, {pipeline_mode = #tpu.pipeline_mode<synchronous>, transform_indices = @transform_3, window_bounds = array<i64: 128, 128>}, {transform_indices = @transform_4, window_bounds = array<i64: 16, 128>}, {transform_indices = @transform_5, window_bounds = array<i64: 16, 128>}]} {
    %c0 = arith.constant 0 : index
    %c0_0 = arith.constant 0 : index
    %c0_1 = arith.constant 0 : index
    %0 = vector.load %arg1[%c0, %c0_0, %c0_1] : memref<1x2x128xf32, #tpu.memory_space<vmem>>, vector<1x2x128xf32>
    %cst = arith.constant dense<0.000000e+00> : vector<2x128xf32>
    %1 = vector.multi_reduction <add>, %0, %cst [0] : vector<1x2x128xf32> to vector<2x128xf32>
    %2 = vector.extract_strided_slice %1 {offsets = [0, 0], sizes = [1, 128], strides = [1, 1]} : vector<2x128xf32> to vector<1x128xf32>
    %cst_2 = arith.constant 0.001953125 : f32
    %3 = vector.broadcast %cst_2 : f32 to vector<1x128xf32>
    %4 = arith.mulf %2, %3 : vector<1x128xf32>
    %5 = vector.extract_strided_slice %1 {offsets = [1, 0], sizes = [1, 128], strides = [1, 1]} : vector<2x128xf32> to vector<1x128xf32>
    %cst_3 = arith.constant 0.001953125 : f32
    %6 = vector.broadcast %cst_3 : f32 to vector<1x128xf32>
    %7 = arith.mulf %5, %6 : vector<1x128xf32>
    %8 = arith.mulf %4, %4 : vector<1x128xf32>
    %9 = arith.subf %7, %8 : vector<1x128xf32>
    %cst_4 = arith.constant 0.000000e+00 : f32
    %10 = vector.broadcast %cst_4 : f32 to vector<1x128xf32>
    %11 = arith.maximumf %9, %10 : vector<1x128xf32>
    %cst_5 = arith.constant 9.99999974E-6 : f32
    %12 = vector.broadcast %cst_5 : f32 to vector<1x128xf32>
    %13 = arith.addf %11, %12 : vector<1x128xf32>
    %14 = math.rsqrt %13 : vector<1x128xf32>
    %c0_6 = arith.constant 0 : index
    %c0_7 = arith.constant 0 : index
    %15 = vector.load %arg2[%c0_6, %c0_7] : memref<1x128xf32, #tpu.memory_space<vmem>>, vector<1x128xf32>
    %16 = arith.mulf %15, %14 : vector<1x128xf32>
    %c0_8 = arith.constant 0 : index
    %c0_9 = arith.constant 0 : index
    %17 = vector.load %arg3[%c0_8, %c0_9] : memref<1x128xf32, #tpu.memory_space<vmem>>, vector<1x128xf32>
    %18 = arith.mulf %4, %16 : vector<1x128xf32>
    %19 = arith.subf %17, %18 : vector<1x128xf32>
    %20 = tpu.concatenate %16, %19 in 0 : vector<1x128xf32>, vector<1x128xf32> -> vector<2x128xf32>
    %c0_10 = arith.constant 0 : index
    %c0_11 = arith.constant 0 : index
    %21 = vector.load %arg4[%c0_10, %c0_11] : memref<128x128xf32, #tpu.memory_space<vmem>>, vector<128x128xf32>
    %cst_12 = arith.constant dense<0.000000e+00> : vector<2x128xf32>
    %22 = tpu.matmul %20, %21, %cst_12 {dimension_numbers = #tpu.dot_dimension_numbers<[1], [0], [0], [1], [0, 0, 1, 1], [], []>} : vector<2x128xf32>, vector<128x128xf32>, vector<2x128xf32> -> vector<2x128xf32>
    %c0_13 = arith.constant 0 : index
    %c0_14 = arith.constant 0 : index
    %23 = vector.load %arg5[%c0_13, %c0_14] : memref<16x128xf32, #tpu.memory_space<vmem>>, vector<16x128xf32>
    %24 = vector.extract_strided_slice %22 {offsets = [0, 0], sizes = [1, 128], strides = [1, 1]} : vector<2x128xf32> to vector<1x128xf32>
    %25 = vector.broadcast %24 : vector<1x128xf32> to vector<16x128xf32>
    %26 = arith.mulf %23, %25 : vector<16x128xf32>
    %27 = vector.extract_strided_slice %22 {offsets = [1, 0], sizes = [1, 128], strides = [1, 1]} : vector<2x128xf32> to vector<1x128xf32>
    %28 = vector.broadcast %27 : vector<1x128xf32> to vector<16x128xf32>
    %29 = arith.addf %26, %28 : vector<16x128xf32>
    %c0_15 = arith.constant 0 : index
    %c0_16 = arith.constant 0 : index
    %30 = vector.load %arg6[%c0_15, %c0_16] : memref<16x128xf32, #tpu.memory_space<vmem>>, vector<16x128xf32>
    tpu.vector_store %arg6[%c0_15, %c0_16], %29 {strides = array<i32>} : memref<16x128xf32, #tpu.memory_space<vmem>>, vector<16x128xf32>,
    return
  }
  func.func @transform_0(%arg0: i32) -> (i32, i32, i32) {
    %c0_i32 = arith.constant 0 : i32
    %c0_i32_0 = arith.constant 0 : i32
    %c0_i32_1 = arith.constant 0 : i32
    %c0_i32_2 = arith.constant 0 : i32
    return %c0_i32, %c0_i32_0, %c0_i32_1 : i32, i32, i32
  }
  func.func @transform_1(%arg0: i32) -> (i32, i32) {
    %c0_i32 = arith.constant 0 : i32
    %c0_i32_0 = arith.constant 0 : i32
    %c0_i32_1 = arith.constant 0 : i32
    return %c0_i32, %c0_i32_0 : i32, i32
  }
  func.func @transform_2(%arg0: i32) -> (i32, i32) {
    %c0_i32 = arith.constant 0 : i32
    %c0_i32_0 = arith.constant 0 : i32
    %c0_i32_1 = arith.constant 0 : i32
    return %c0_i32, %c0_i32_0 : i32, i32
  }
  func.func @transform_3(%arg0: i32) -> (i32, i32) {
    %c0_i32 = arith.constant 0 : i32
    %c0_i32_0 = arith.constant 0 : i32
    %c0_i32_1 = arith.constant 0 : i32
    return %c0_i32, %c0_i32_0 : i32, i32
  }
  func.func @transform_4(%arg0: i32) -> (i32, i32) {
    %c0_i32 = arith.constant 0 : i32
    %c0_i32_0 = arith.constant 0 : i32
    return %arg0, %c0_i32 : i32, i32
  }
  func.func @transform_5(%arg0: i32) -> (i32, i32) {
    %c0_i32 = arith.constant 0 : i32
    %c0_i32_0 = arith.constant 0 : i32
    return %arg0, %c0_i32 : i32, i32
  }
}

</mosaic_0001>

<llo_original>
// kernel: batch_norm_forward.2
$region0: #{batch_norm_forward.2}
  #allocation0 [shape = 'u32[]', space=smem, size = 0x4, offset = 0x4, fixed_abs, tag = 'smem constant byte address 0x4 - core index']
  #allocation1 [shape = 'u32[144,128]{1,0:T(1,128)}', space=vmem, size = 0x12000, scoped, tag = 'internal scratch']
  %s0 = inlined_call_operand.vmem [shape: f32[16,128], index: 0, kind: input, shape index: {}]
  %s1 = inlined_call_operand.vmem [shape: f32[128,128], index: 1, kind: input, shape index: {}]
  %s2 = inlined_call_operand.vmem [shape: f32[1,2,128], index: 2, kind: output, shape index: {}]
  %s3 = sld [smem:[#allocation0]]
  $region22: #{batch_norm_forward.2} parent=0
    _
  %s5 = ssub.s32 1, %s3
  %s6 = scalar_select 0, %s5, %s3
  // Predicated region
  $region2: #{batch_norm_forward.2} parent=0 // pred_check
    _
  $region3: #{batch_norm_forward.2} parent=0 // pred_check_branch
    %8 = sbr.rel (0) target = $region5
  $region4: #{batch_norm_forward.2} parent=0 // pred_region
    %s9 = sadd.s32 0, 0
    %p10 = scmp.lt.s32.totalorder %s9, 0
    %s11 = scalar_select %p10, %s9, 0
    %s12 = smul.u32 2, %s11
    %p13 = scmp.lt.s32.totalorder %s12, 1
    %s14 = scalar_select %p13, %s12, 1
    %s15 = smul.addr %s14, 8
    %s16 = scalar_lea.vmem %s0, %s15
    %s17 = sadd.s32 0, 0
    %p18 = scmp.lt.s32.totalorder %s17, 0
    %s19 = scalar_select %p18, %s17, 0
    %s20 = smul.u32 2, %s19
  $region5: #{batch_norm_forward.2} parent=0 // pred_fallthru
    _
  // Predicated region
  $region6: #{batch_norm_forward.2} parent=0 // pred_check
    _
  $region7: #{batch_norm_forward.2} parent=0 // pred_check_branch
    %22 = sbr.rel (0) target = $region9
  $region8: #{batch_norm_forward.2} parent=0 // pred_region
    _
  $region9: #{batch_norm_forward.2} parent=0 // pred_fallthru
    _
  %s23 = sadd.s32 0, 0
  %p24 = scmp.lt.s32.totalorder %s23, 0
  %s25 = scalar_select %p24, %s23, 0
  %s26 = smul.u32 2, %s25
  %p27 = scmp.lt.s32.totalorder %s26, 1
  %s28 = scalar_select %p27, %s26, 1
  %s29 = smul.addr %s28, 8
  %s30 = scalar_lea.vmem %s0, %s29
  %s31 = sadd.s32 0, 0
  %p32 = scmp.lt.s32.totalorder %s31, 0
  %s33 = scalar_select %p32, %s31, 0
  %s34 = smul.u32 2, %s33
  %p35 = scmp.lt.s32.totalorder %s34, 1
  %s36 = scalar_select %p35, %s34, 1
  %s37 = smul.addr %s36, 8
  %s38 = scalar_lea.vmem %s0, %s37
  %s39 = sadd.s32 0, 0
  %p40 = scmp.lt.s32.totalorder %s39, 0
  %s41 = scalar_select %p40, %s39, 0
  %s42 = smul.u32 2, %s41
  %p43 = scmp.eq.s32.totalorder 0, 0
  // Predicated region
  $region10: #{batch_norm_forward.2} parent=0 // pred_check
    %p44 = pneg %p43
  $region11: #{batch_norm_forward.2} parent=0 // pred_check_branch
    %46 = sbr.rel (%p44) target = $region13
  $region12: #{batch_norm_forward.2} parent=0 // pred_region
    %47 = vst [vmem:[%s2] sm:$0x3] 0.0
  $region13: #{batch_norm_forward.2} parent=0 // pred_fallthru
    _
  %v48 = vld [vmem:[%s38] sm:$0xff]
  %v49 = vld [vmem:[%s38 + $0x8] sm:$0xff]
  %v50 = vadd.f32 %v48, %v49
  %v51 = vrot.slane %v50, 4
  %v52 = vadd.f32 %v50, %v51
  %v53 = vrot.slane %v52, 2
  %v54 = vadd.f32 %v52, %v53
  %v55 = vrot.slane %v54, 1
  %v56 = vadd.f32 %v54, %v55
  %v57 = vmul.f32 %v48, %v48
  %v58 = vmul.f32 %v49, %v49
  %v59 = vadd.f32 %v57, %v58
  %v60 = vrot.slane %v59, 4
  %v61 = vadd.f32 %v59, %v60
  %v62 = vrot.slane %v61, 2
  %v63 = vadd.f32 %v61, %v62
  %v64 = vrot.slane %v63, 1
  %v65 = vadd.f32 %v63, %v64
  %vm66 = vcmask 1040384
  %v67 = vsel %vm66, %v56, %v65
  %v68 = vld [vmem:[%s1] sm:$0xff]
  %v69 = vld [vmem:[%s1 + $0x8] sm:$0xff]
  %v70 = vld [vmem:[%s1 + $0x10] sm:$0xff]
  %v71 = vld [vmem:[%s1 + $0x18] sm:$0xff]
  %v72 = vld [vmem:[%s1 + $0x20] sm:$0xff]
  %v73 = vld [vmem:[%s1 + $0x28] sm:$0xff]
  %v74 = vld [vmem:[%s1 + $0x30] sm:$0xff]
  %v75 = vld [vmem:[%s1 + $0x38] sm:$0xff]
  %v76 = vld [vmem:[%s1 + $0x40] sm:$0xff]
  %v77 = vld [vmem:[%s1 + $0x48] sm:$0xff]
  %v78 = vld [vmem:[%s1 + $0x50] sm:$0xff]
  %v79 = vld [vmem:[%s1 + $0x58] sm:$0xff]
  %v80 = vld [vmem:[%s1 + $0x60] sm:$0xff]
  %v81 = vld [vmem:[%s1 + $0x68] sm:$0xff]
  %v82 = vld [vmem:[%s1 + $0x70] sm:$0xff]
  %v83 = vld [vmem:[%s1 + $0x78] sm:$0xff]
  %84 = vmatprep.subr.mxu0 0.0
  %85 = vmatpush1.msra.mxu0 %v83
  %86 = vmatprep.subr.mxu0 0.0
  %87 = vmatpush1.msra.mxu0 %v82
  %88 = vmatprep.subr.mxu0 0.0
  %89 = vmatpush1.msra.mxu0 %v81
  %90 = vmatprep.subr.mxu0 0.0
  %91 = vmatpush1.msra.mxu0 %v80
  %92 = vmatprep.subr.mxu0 0.0
  %93 = vmatpush1.msra.mxu0 %v79
  %94 = vmatprep.subr.mxu0 0.0
  %95 = vmatpush1.msra.mxu0 %v78
  %96 = vmatprep.subr.mxu0 0.0
  %97 = vmatpush1.msra.mxu0 %v77
  %98 = vmatprep.subr.mxu0 0.0
  %99 = vmatpush1.msra.mxu0 %v76
  %100 = vmatprep.subr.mxu0 0.0
  %101 = vmatpush1.msra.mxu0 %v75
  %102 = vmatprep.subr.mxu0 0.0
  %103 = vmatpush1.msra.mxu0 %v74
  %104 = vmatprep.subr.mxu0 0.0
  %105 = vmatpush1.msra.mxu0 %v73
  %106 = vmatprep.subr.mxu0 0.0
  %107 = vmatpush1.msra.mxu0 %v72
  %108 = vmatprep.subr.mxu0 0.0
  %109 = vmatpush1.msra.mxu0 %v71
  %110 = vmatprep.subr.mxu0 0.0
  %111 = vmatpush1.msra.mxu0 %v70
  %112 = vmatprep.subr.mxu0 0.0
  %113 = vmatpush1.msra.mxu0 %v69
  %114 = vmatprep.subr.mxu0 0.0
  %115 = vmatpush1.msra.mxu0 %v68
  %116 = vmatprep.subr.mxu0 0.0
  %117 = vmatpush2.msra.mxu0 0.0
  %118 = vmatprep.subr.mxu0 0.0
  %119 = vmatpush2.msra.mxu0 0.0
  %120 = vmatprep.subr.mxu0 0.0
  %121 = vmatpush2.msra.mxu0 0.0
  %122 = vmatprep.subr.mxu0 0.0
  %123 = vmatpush2.msra.mxu0 0.0
  %124 = vmatprep.subr.mxu0 0.0
  %125 = vmatpush2.msra.mxu0 0.0
  %126 = vmatprep.subr.mxu0 0.0
  %127 = vmatpush2.msra.mxu0 0.0
  %128 = vmatprep.subr.mxu0 0.0
  %129 = vmatpush2.msra.mxu0 0.0
  %130 = vmatprep.subr.mxu0 0.0
  %131 = vmatpush2.msra.mxu0 0.0
  %132 = vmatprep.subr.mxu0 0.0
  %133 = vmatpush2.msra.mxu0 0.0
  %134 = vmatprep.subr.mxu0 0.0
  %135 = vmatpush2.msra.mxu0 0.0
  %136 = vmatprep.subr.mxu0 0.0
  %137 = vmatpush2.msra.mxu0 0.0
  %138 = vmatprep.subr.mxu0 0.0
  %139 = vmatpush2.msra.mxu0 0.0
  %140 = vmatprep.subr.mxu0 0.0
  %141 = vmatpush2.msra.mxu0 0.0
  %142 = vmatprep.subr.mxu0 0.0
  %143 = vmatpush2.msra.mxu0 0.0
  %144 = vmatprep.subr.mxu0 0.0
  %145 = vmatpush2.msra.mxu0 0.0
  %146 = vmatprep.subr.mxu0 0.0
  %147 = vmatpush2.msra.mxu0 0.0
  %148 = vmatprep.mubr.f32.mxu0 0.0
  %149 = vmatmul.mubr.f32.gmra.mxu0 %v67
  %v150 = vpop.f32.mrf.mxu0
  %v151 = vadd.f32 0.0, %v150
  %v152 = vpop.f32.mrf.mxu0
  %153 = vdwg.mxu0
  %v154 = vld [vmem:[%s2] sm:$0x3]
  %v155 = vadd.f32 %v154, %v151
  %156 = vst [vmem:[%s2] sm:$0x3] %v155
  // Predicated region
  $region14: #{batch_norm_forward.2} parent=0 // pred_check
    _
  $region15: #{batch_norm_forward.2} parent=0 // pred_check_branch
    %158 = sbr.rel (0) target = $region17
  $region16: #{batch_norm_forward.2} parent=0 // pred_region
    _
  $region17: #{batch_norm_forward.2} parent=0 // pred_fallthru
    _
  // Predicated region
  $region18: #{batch_norm_forward.2} parent=0 // pred_check
    _
  $region19: #{batch_norm_forward.2} parent=0 // pred_check_branch
    %160 = sbr.rel (0) target = $region21
  $region20: #{batch_norm_forward.2} parent=0 // pred_region
    _
  $region21: #{batch_norm_forward.2} parent=0 // pred_fallthru
    _

// kernel: batch_norm_forward.3
$region0: #{batch_norm_forward.3}
  #allocation0 [shape = 'u32[]', space=smem, size = 0x4, offset = 0x4, fixed_abs, tag = 'smem constant byte address 0x4 - core index']
  #allocation1 [shape = 'u32[144,128]{1,0:T(1,128)}', space=vmem, size = 0x12000, scoped, tag = 'internal scratch']
  %s0 = inlined_call_operand.vmem [shape: f32[1,2,128], index: 0, kind: input, shape index: {}]
  %s1 = inlined_call_operand.vmem [shape: f32[1,128], index: 1, kind: input, shape index: {}]
  %s2 = inlined_call_operand.vmem [shape: f32[1,128], index: 2, kind: input, shape index: {}]
  %s3 = inlined_call_operand.vmem [shape: f32[128,128], index: 3, kind: input, shape index: {}]
  %s4 = inlined_call_operand.vmem [shape: f32[16,128], index: 4, kind: input, shape index: {}]
  %s5 = inlined_call_operand.hbm [shape: f32[16,128], index: 5, kind: output, shape index: {}]
  %s6 = sld [smem:[#allocation0]]
  $region30: #{batch_norm_forward.3} parent=0
    _
  %s8 = ssub.s32 1, %s6
  %s9 = scalar_select 0, %s8, %s6
  $region1: #{batch_norm_forward.3} parent=0
    #allocation2 [shape = 'u8[8192]{0}', space=vmem, size = 0x2000, scoped, tag = 'output window, operand 0, single buffered']
    #allocation3 [shape = 's32[1]{0}', space=sflag, size = 0x4, scoped, tag = 'scoped memory for batch_norm_forward.3']
    %10 = vsyncpa [#allocation3], 0
    // Predicated region
    $region2: #{batch_norm_forward.3} parent=1 // pred_check
      _
    $region3: #{batch_norm_forward.3} parent=1 // pred_check_branch
      %12 = sbr.rel (0) target = $region5
    $region4: #{batch_norm_forward.3} parent=1 // pred_region
      _
    $region5: #{batch_norm_forward.3} parent=1 // pred_fallthru
      _
    // Predicated region
    $region6: #{batch_norm_forward.3} parent=1 // pred_check
      _
    $region7: #{batch_norm_forward.3} parent=1 // pred_check_branch
      %14 = sbr.rel (0) target = $region9
    $region8: #{batch_norm_forward.3} parent=1 // pred_region
      _
    $region9: #{batch_norm_forward.3} parent=1 // pred_fallthru
      _
    // Predicated region
    $region10: #{batch_norm_forward.3} parent=1 // pred_check
      _
    $region11: #{batch_norm_forward.3} parent=1 // pred_check_branch
      %16 = sbr.rel (0) target = $region13
    $region12: #{batch_norm_forward.3} parent=1 // pred_region
      _
    $region13: #{batch_norm_forward.3} parent=1 // pred_fallthru
      _
    // Predicated region
    $region14: #{batch_norm_forward.3} parent=1 // pred_check
      _
    $region15: #{batch_norm_forward.3} parent=1 // pred_check_branch
      %18 = sbr.rel (0) target = $region17
    $region16: #{batch_norm_forward.3} parent=1 // pred_region
      _
    $region17: #{batch_norm_forward.3} parent=1 // pred_fallthru
      _
    // Predicated region
    $region18: #{batch_norm_forward.3} parent=1 // pred_check
      _
    $region19: #{batch_norm_forward.3} parent=1 // pred_check_branch
      %20 = sbr.rel (0) target = $region21
    $region20: #{batch_norm_forward.3} parent=1 // pred_region
      _
    $region21: #{batch_norm_forward.3} parent=1 // pred_fallthru
      _
    %v21 = vld [vmem:[%s0] sm:$0x3]
    %v22 = vadd.f32 %v21, 0.0
    %v23 = vmul.f32 %v22, 0.001953125
    %v24 = vmul.f32 %v23, %v23
    %v26 = vrot.slane %v24, 7
    %v28 = vsub.f32 %v23, %v26
    %v29 = vmax.f32 %v28, 0.0
    %v30 = vadd.f32 %v29, 1e-05
    %v31 = vrsqrt.pop %v30
    %v32 = vld [vmem:[%s1] sm:$0x1]
    %v35 = vunpack.c.l.s4 1966171168
    %v36 = vunpack.c.0.s8 %v35
    %v37 = vlaneseq
    %v38 = vshrl.u32 %v37, 7
    %v39 = vsub.s32 %v36, %v38
    %v40 = vrot.slane %v31, %v39
    %v41 = vcombine.high %v40, %v40
    %v43 = vunpack.c.l.s4 1966171168
    %v44 = vunpack.c.0.s8 %v43
    %v45 = vlaneseq
    %v46 = vshrl.u32 %v45, 7
    %v47 = vsub.s32 %v44, %v46
    %v48 = vrot.slane %v41, %v47
    %v50 = vmul.f32 %v32, %v48
    %v51 = vld [vmem:[%s2] sm:$0x1]
    %v52 = vmul.f32 %v23, %v50
    %v53 = vsub.f32 %v51, %v52
    %v55 = vlaneseq
    %v56 = vshrl.u32 %v55, 7
    %v57 = vsub.s32 0, %v56
    %v58 = vrot.slane %v53, %v57
    %vm60 = vcmask 1040384
    %v61 = vsel %vm60, %v50, %v58
    %v62 = vld [vmem:[%s3] sm:$0xff]
    %v63 = vld [vmem:[%s3 + $0x8] sm:$0xff]
    %v64 = vld [vmem:[%s3 + $0x10] sm:$0xff]
    %v65 = vld [vmem:[%s3 + $0x18] sm:$0xff]
    %v66 = vld [vmem:[%s3 + $0x20] sm:$0xff]
    %v67 = vld [vmem:[%s3 + $0x28] sm:$0xff]
    %v68 = vld [vmem:[%s3 + $0x30] sm:$0xff]
    %v69 = vld [vmem:[%s3 + $0x38] sm:$0xff]
    %v70 = vld [vmem:[%s3 + $0x40] sm:$0xff]
    %v71 = vld [vmem:[%s3 + $0x48] sm:$0xff]
    %v72 = vld [vmem:[%s3 + $0x50] sm:$0xff]
    %v73 = vld [vmem:[%s3 + $0x58] sm:$0xff]
    %v74 = vld [vmem:[%s3 + $0x60] sm:$0xff]
    %v75 = vld [vmem:[%s3 + $0x68] sm:$0xff]
    %v76 = vld [vmem:[%s3 + $0x70] sm:$0xff]
    %v77 = vld [vmem:[%s3 + $0x78] sm:$0xff]
    %78 = vmatprep.subr.mxu0 0.0
    %79 = vmatpush1.msra.mxu0 %v77
    %80 = vmatprep.subr.mxu0 0.0
    %81 = vmatpush1.msra.mxu0 %v76
    %82 = vmatprep.subr.mxu0 0.0
    %83 = vmatpush1.msra.mxu0 %v75
    %84 = vmatprep.subr.mxu0 0.0
    %85 = vmatpush1.msra.mxu0 %v74
    %86 = vmatprep.subr.mxu0 0.0
    %87 = vmatpush1.msra.mxu0 %v73
    %88 = vmatprep.subr.mxu0 0.0
    %89 = vmatpush1.msra.mxu0 %v72
    %90 = vmatprep.subr.mxu0 0.0
    %91 = vmatpush1.msra.mxu0 %v71
    %92 = vmatprep.subr.mxu0 0.0
    %93 = vmatpush1.msra.mxu0 %v70
    %94 = vmatprep.subr.mxu0 0.0
    %95 = vmatpush1.msra.mxu0 %v69
    %96 = vmatprep.subr.mxu0 0.0
    %97 = vmatpush1.msra.mxu0 %v68
    %98 = vmatprep.subr.mxu0 0.0
    %99 = vmatpush1.msra.mxu0 %v67
    %100 = vmatprep.subr.mxu0 0.0
    %101 = vmatpush1.msra.mxu0 %v66
    %102 = vmatprep.subr.mxu0 0.0
    %103 = vmatpush1.msra.mxu0 %v65
    %104 = vmatprep.subr.mxu0 0.0
    %105 = vmatpush1.msra.mxu0 %v64
    %106 = vmatprep.subr.mxu0 0.0
    %107 = vmatpush1.msra.mxu0 %v63
    %108 = vmatprep.subr.mxu0 0.0
    %109 = vmatpush1.msra.mxu0 %v62
    %110 = vmatprep.subr.mxu0 0.0
    %111 = vmatpush2.msra.mxu0 0.0
    %112 = vmatprep.subr.mxu0 0.0
    %113 = vmatpush2.msra.mxu0 0.0
    %114 = vmatprep.subr.mxu0 0.0
    %115 = vmatpush2.msra.mxu0 0.0
    %116 = vmatprep.subr.mxu0 0.0
    %117 = vmatpush2.msra.mxu0 0.0
    %118 = vmatprep.subr.mxu0 0.0
    %119 = vmatpush2.msra.mxu0 0.0
    %120 = vmatprep.subr.mxu0 0.0
    %121 = vmatpush2.msra.mxu0 0.0
    %122 = vmatprep.subr.mxu0 0.0
    %123 = vmatpush2.msra.mxu0 0.0
    %124 = vmatprep.subr.mxu0 0.0
    %125 = vmatpush2.msra.mxu0 0.0
    %126 = vmatprep.subr.mxu0 0.0
    %127 = vmatpush2.msra.mxu0 0.0
    %128 = vmatprep.subr.mxu0 0.0
    %129 = vmatpush2.msra.mxu0 0.0
    %130 = vmatprep.subr.mxu0 0.0
    %131 = vmatpush2.msra.mxu0 0.0
    %132 = vmatprep.subr.mxu0 0.0
    %133 = vmatpush2.msra.mxu0 0.0
    %134 = vmatprep.subr.mxu0 0.0
    %135 = vmatpush2.msra.mxu0 0.0
    %136 = vmatprep.subr.mxu0 0.0
    %137 = vmatpush2.msra.mxu0 0.0
    %138 = vmatprep.subr.mxu0 0.0
    %139 = vmatpush2.msra.mxu0 0.0
    %140 = vmatprep.subr.mxu0 0.0
    %141 = vmatpush2.msra.mxu0 0.0
    %142 = vmatprep.mubr.f32.mxu0 0.0
    %143 = vmatmul.mubr.f32.gmra.mxu0 %v61
    %v144 = vpop.f32.mrf.mxu0
    %v145 = vadd.f32 0.0, %v144
    %v146 = vpop.f32.mrf.mxu0
    %147 = vdwg.mxu0
    %v148 = vld [vmem:[%s4] sm:$0xff]
    %v149 = vld [vmem:[%s4 + $0x8] sm:$0xff]
    %v150 = vlaneseq
    %v151 = vshrl.u32 %v150, 7
    %v152 = vsub.s32 0, %v151
    %v153 = vrot.slane %v145, %v152
    %v154 = vmul.f32 %v148, %v153
    %v155 = vmul.f32 %v149, %v153
    %v156 = vlaneseq
    %v157 = vshrl.u32 %v156, 7
    %v158 = vsub.s32 1, %v157
    %v159 = vrot.slane %v145, %v158
    %v160 = vadd.f32 %v154, %v159
    %v161 = vadd.f32 %v155, %v159
    %162 = vst [vmem:[#allocation2] sm:$0xff] %v160
    %163 = vst [vmem:[#allocation2 + $0x8] sm:$0xff] %v161
    // Predicated region
    $region22: #{batch_norm_forward.3} parent=1 // pred_check
      _
    $region23: #{batch_norm_forward.3} parent=1 // pred_check_branch
      %165 = sbr.rel (0) target = $region25
    $region24: #{batch_norm_forward.3} parent=1 // pred_region
      %s167 = ssub.s32 256, 256
      %168 = vsyncadd [#allocation3], %s167
      %s169 = sshll.u32 [#allocation2], 4
      %s170 = int_to_ptr.vmem [resolvable:$true] %s169
      %175 = dma.vmem_to_hbm [thread:$0]  %s170, 256, %s5, [#allocation3], 128, 128, 8
    $region25: #{batch_norm_forward.3} parent=1 // pred_fallthru
      _
    // Predicated region
    $region26: #{batch_norm_forward.3} parent=1 // pred_check
      _
    $region27: #{batch_norm_forward.3} parent=1 // pred_check_branch
      %177 = sbr.rel (0) target = $region29
    $region28: #{batch_norm_forward.3} parent=1 // pred_region
      %178 = dma.done [#allocation3], 256
    $region29: #{batch_norm_forward.3} parent=1 // pred_fallthru
      _
    %179 = vsyncpa [#allocation3], 1

</llo_original>
